<compile_context>
chip_gen: v5e
topology: v5e:2x2
jax: 0.10.0
libtpu: 0.0.40
codegen_flags: <defaults>
</compile_context>

<pallas_src>
import functools

import jax
import jax.numpy as jnp
from jax import lax
from jax.experimental import pallas as pl
from jax.experimental.pallas import tpu as pltpu


def _round_up(x, m):
    return ((x + m - 1) // m) * m


def _vmem_capacity_bytes():
    """Physical VMEM per TensorCore; conservative default if the query is unavailable."""
    try:
        cap = int(pltpu.get_tpu_info().vmem_capacity_bytes)
        if cap > 0:
            return cap
    except Exception:
        pass
    return 64 * 1024 * 1024  # v7x per-TC capacity; safe lower bound everywhere


def _pick_batch_tile(B, tb):
    """Largest multiple-of-8 tile <= tb dividing round_up(B, 8); prefer >= 2 grid steps."""
    b8 = _round_up(max(B, 1), 8)
    tb_cap = max(8, _round_up(min(tb, b8), 8))
    best = None
    for t in range(tb_cap, 7, -8):
        if b8 % t == 0:
            if best is None:
                best = t
            if b8 // t >= 2:  # >=2 steps on the leading axis keeps both v7x TCs busy
                return t, b8
    return (best if best is not None else 8), b8


def _group_vmem_bytes(group, tb, x_itemsize):
    """Conservative VMEM footprint for running `group` as one fused, resident kernel."""
    total = 2 * tb * group[0]["in_pad"] * x_itemsize          # double-buffered x tile
    total += 2 * tb * group[-1]["out_pad"] * 4                # double-buffered out tile
    for L in group:
        total += 2 * (L["w"].size * L["w"].dtype.itemsize + L["b"].size * 4)
        total += 2 * tb * L["out_pad"] * 4                    # live f32 temporaries
    return total


# ---------------------------------------------------------------------------
# Fused group kernel: several maxout layers chained on a VMEM-resident batch
# tile (the K=1 linear head is a special case), optional fused log-softmax.
# ---------------------------------------------------------------------------
def _group_kernel(*refs, Ks, with_logsoftmax, n_classes):
    # refs = (x_ref, w_ref_0, b_ref_0, ..., w_ref_{L-1}, b_ref_{L-1}, o_ref)
    x_ref = refs[0]
    o_ref = refs[-1]
    h = x_ref[...]
    for li, K in enumerate(Ks):
        w_ref = refs[1 + 2 * li]          # (K, in_pad, out_pad)
        b_ref = refs[2 + 2 * li]          # (K, 1, out_pad), f32
        xw = h.astype(w_ref.dtype)
        z = jnp.dot(xw, w_ref[0], preferred_element_type=jnp.float32) + b_ref[0]
        for k in range(1, K):             # K is small & static -> unrolled MXU matmuls
            zk = jnp.dot(xw, w_ref[k], preferred_element_type=jnp.float32) + b_ref[k]
            z = jnp.maximum(z, zk)
        h = z
    if with_logsoftmax:
        cols = lax.broadcasted_iota(jnp.int32, h.shape, 1)
        h = jnp.where(cols < n_classes, h, -jnp.inf)   # mask padded class columns
        m = jnp.max(h, axis=-1, keepdims=True)
        lse = jnp.log(jnp.sum(jnp.exp(h - m), axis=-1, keepdims=True)) + m
        h = h - lse
    o_ref[...] = h.astype(o_ref.dtype)


def _maxout_group_forward(xp, group, *, tb, vmem_limit, out_dtype,
                          with_logsoftmax, n_classes):
    """xp: (b_pad, in_pad) padded activations; returns (b_pad, out_pad_last)."""
    b_pad, in_pad = xp.shape
    assert in_pad == group[0]["in_pad"]
    assert b_pad % tb == 0
    out_pad = group[-1]["out_pad"]
    nb = b_pad // tb
    Ks = tuple(L["K"] for L in group)

    in_specs = [pl.BlockSpec((tb, in_pad), lambda i: (i, 0))]
    args = [xp]
    flops = 0
    bytes_accessed = (b_pad * in_pad * xp.dtype.itemsize
                      + b_pad * out_pad * jnp.dtype(out_dtype).itemsize)
    for L in group:
        w, b = L["w"], L["b"]
        # Whole-array blocks with a constant index map: resident across the batch sweep.
        in_specs.append(pl.BlockSpec(w.shape, lambda i: (0, 0, 0)))
        in_specs.append(pl.BlockSpec(b.shape, lambda i: (0, 0, 0)))
        args += [w, b]
        flops += 2 * b_pad * L["in_pad"] * L["out_pad"] * L["K"]
        bytes_accessed += w.size * w.dtype.itemsize + b.size * 4

    cost = pl.CostEstimate(
        flops=int(flops),
        transcendentals=int(b_pad * out_pad if with_logsoftmax else 0),
        bytes_accessed=int(bytes_accessed),
    )
    kernel = functools.partial(_group_kernel, Ks=Ks,
                               with_logsoftmax=with_logsoftmax, n_classes=n_classes)
    return pl.pallas_call(
        kernel,
        out_shape=jax.ShapeDtypeStruct((b_pad, out_pad), out_dtype),
        grid=(nb,),
        in_specs=in_specs,
        out_specs=pl.BlockSpec((tb, out_pad), lambda i: (i, 0)),
        compiler_params=pltpu.CompilerParams(
            dimension_semantics=("parallel",),
            vmem_limit_bytes=vmem_limit),
        cost_estimate=cost,
    )(*args)


# ---------------------------------------------------------------------------
# Tiled single-layer fallback (layer too wide to keep its weight slab resident).
# ---------------------------------------------------------------------------
def _maxout_layer_tiled_kernel(x_ref, w_ref, b_ref, o_ref, *, K):
    x = x_ref[...].astype(w_ref.dtype)
    z = jnp.dot(x, w_ref[0], preferred_element_type=jnp.float32) + b_ref[0]
    for k in range(1, K):
        z = jnp.maximum(z, jnp.dot(x, w_ref[k], preferred_element_type=jnp.float32)
                        + b_ref[k])
    o_ref[...] = z.astype(o_ref.dtype)


def _maxout_layer_tiled_forward(xp, layer, *, tb, tn, vmem_limit, out_dtype):
    b_pad, in_pad = xp.shape
    assert in_pad == layer["in_pad"]
    w, b = layer["w"], layer["b"]
    K, out_pad = layer["K"], layer["out_pad"]

    tn_eff = min(_round_up(max(tn, 128), 128), out_pad)
    nj = pl.cdiv(out_pad, tn_eff)       # ragged last fan_out tile handled by Pallas
    ni = b_pad // tb
    cost = pl.CostEstimate(
        flops=2 * b_pad * in_pad * out_pad * K,
        transcendentals=0,
        bytes_accessed=int(nj * b_pad * in_pad * xp.dtype.itemsize
                           + w.size * w.dtype.itemsize + b.size * 4
                           + b_pad * out_pad * jnp.dtype(out_dtype).itemsize),
    )
    kernel = functools.partial(_maxout_layer_tiled_kernel, K=K)
    if nj >= 2:
        # fan_out tiles lead (disjoint weight tiles per TC); batch innermost so each
        # weight tile is DMA'd exactly once and stays resident across the batch sweep.
        grid = (nj, ni)
        in_specs = [pl.BlockSpec((tb, in_pad), lambda j, i: (i, 0)),
                    pl.BlockSpec((K, in_pad, tn_eff), lambda j, i: (0, 0, j)),
                    pl.BlockSpec((K, 1, tn_eff), lambda j, i: (0, 0, j))]
        out_specs = pl.BlockSpec((tb, tn_eff), lambda j, i: (i, j))
        sem = ("parallel", "parallel")
    else:
        # Single fan_out tile: lead with the batch axis so both v7x TCs get work.
        grid = (ni,)
        in_specs = [pl.BlockSpec((tb, in_pad), lambda i: (i, 0)),
                    pl.BlockSpec((K, in_pad, tn_eff), lambda i: (0, 0, 0)),
                    pl.BlockSpec((K, 1, tn_eff), lambda i: (0, 0, 0))]
        out_specs = pl.BlockSpec((tb, tn_eff), lambda i: (i, 0))
        sem = ("parallel",)
    # TODO(synk): add an in_pad ("arbitrary") reduction grid axis with K f32 VMEM scratch
    # accumulators for layers whose (K, in_pad, tn_eff) weight slab alone exceeds VMEM.
    return pl.pallas_call(
        kernel,
        out_shape=jax.ShapeDtypeStruct((b_pad, out_pad), out_dtype),
        grid=grid,
        in_specs=in_specs,
        out_specs=out_specs,
        compiler_params=pltpu.CompilerParams(
            dimension_semantics=sem, vmem_limit_bytes=vmem_limit),
        cost_estimate=cost,
    )(xp, w, b)


# ---------------------------------------------------------------------------
# Standalone row-wise LogSoftmax (only used if the head ran in the tiled path).
# ---------------------------------------------------------------------------
def _log_softmax_kernel(z_ref, o_ref, *, n_classes):
    z = z_ref[...].astype(jnp.float32)
    cols = lax.broadcasted_iota(jnp.int32, z.shape, 1)
    z = jnp.where(cols < n_classes, z, -jnp.inf)
    m = jnp.max(z, axis=-1, keepdims=True)
    lse = jnp.log(jnp.sum(jnp.exp(z - m), axis=-1, keepdims=True)) + m
    o_ref[...] = (z - lse).astype(o_ref.dtype)


def log_softmax_forward(z, n_classes, *, tb, vmem_limit):
    b_pad, c_pad = z.shape
    assert b_pad % tb == 0
    return pl.pallas_call(
        functools.partial(_log_softmax_kernel, n_classes=n_classes),
        out_shape=jax.ShapeDtypeStruct((b_pad, c_pad), jnp.float32),
        grid=(b_pad // tb,),
        in_specs=[pl.BlockSpec((tb, c_pad), lambda i: (i, 0))],
        out_specs=pl.BlockSpec((tb, c_pad), lambda i: (i, 0)),
        compiler_params=pltpu.CompilerParams(
            dimension_semantics=("parallel",), vmem_limit_bytes=vmem_limit),
    )(z)


# ---------------------------------------------------------------------------
# Parameter construction (mirrors init_params / create_linear_layer).
# ---------------------------------------------------------------------------
def init_maxout_params(key, size_in, fan_out, K, zero_bias=True):
    # Deterministic He-normal-style stand-in for init_params() in training_main.py.
    wkey, bkey = jax.random.split(key)
    weight = jax.random.normal(wkey, (fan_out, K, size_in), jnp.float32)
    weight = weight * jnp.sqrt(2.0 / size_in)
    if zero_bias:
        bias = jnp.zeros((fan_out, K), jnp.float32)
    else:
        bias = 0.01 * jax.random.normal(bkey, (fan_out, K), jnp.float32)
    return weight, bias


def init_linear_params(key, fan_in, fan_out, zero_bias=True):
    wkey, bkey = jax.random.split(key)
    weight = jax.random.normal(wkey, (fan_out, fan_in), jnp.float32) * jnp.sqrt(2.0 / fan_in)
    if zero_bias:
        bias = jnp.zeros((fan_out,), jnp.float32)
    else:
        bias = 0.01 * jax.random.normal(bkey, (fan_out,), jnp.float32)
    return weight, bias


def pack_maxout_params(weight, bias, in_pad, *, param_dtype=jnp.float32):
    """PyTorch (fan_out, K, size_in)/(fan_out, K) -> kernel layout, done ONCE.

    Stored as w: (K, in_pad, out_pad), b: (K, 1, out_pad), out_pad = round_up(fan_out, 128),
    padded fan_in rows / fan_out cols are exactly zero so padded activations flow through
    unchanged and the forward never re-transposes / re-pads weights in HBM.
    """
    fan_out, K, size_in = weight.shape
    assert in_pad >= size_in
    out_pad = _round_up(fan_out, 128)
    w = jnp.transpose(weight, (1, 2, 0))                                   # (K, size_in, fan_out)
    w = jnp.pad(w, ((0, 0), (0, in_pad - size_in), (0, out_pad - fan_out)))
    b = jnp.transpose(bias, (1, 0))[:, None, :]                            # (K, 1, fan_out)
    b = jnp.pad(b, ((0, 0), (0, 0), (0, out_pad - fan_out)))
    return {
        "w": w.astype(param_dtype),
        "b": b.astype(jnp.float32),       # bias / accumulate always f32
        "K": int(K),
        "fan_in": int(size_in),
        "fan_out": int(fan_out),
        "in_pad": int(in_pad),
        "out_pad": int(out_pad),
    }


def build_maxout_net(key, input_size, hidden_sizes, output_size, K,
                     zero_bias=True, param_dtype=jnp.float32):
    keys = jax.random.split(key, len(hidden_sizes) + 1)
    layers, torch_maxout = [], []
    fan_in = input_size
    in_pad = _round_up(input_size, 128)           # lane-dense first-layer input
    for i, h in enumerate(hidden_sizes):
        w, b = init_maxout_params(keys[i], fan_in, h, K, zero_bias)
        packed = pack_maxout_params(w, b, in_pad, param_dtype=param_dtype)
        layers.append(packed)
        torch_maxout.append((w, b))
        fan_in, in_pad = h, packed["out_pad"]
    lw, lb = init_linear_params(keys[-1], fan_in, output_size, zero_bias)
    layers.append(pack_maxout_params(lw[:, None, :], lb[:, None], in_pad,
                                     param_dtype=param_dtype))   # nn.Linear == K=1 maxout
    params = {"layers": layers, "n_classes": int(output_size)}
    torch_params = {"maxout": torch_maxout, "linear": (lw, lb)}
    return params, torch_params


# ---------------------------------------------------------------------------
# Forward pass.
# ---------------------------------------------------------------------------
def maxout_net_forward(x, params, *, tb=256, tn=512, interm_dtype=None):
    """Pallas forward matching MaxoutNet.forward; returns (B, n_classes) f32 log-probs."""
    layers = params["layers"]
    n_classes = params["n_classes"]
    B, in_size = x.shape
    in_pad0 = layers[0]["in_pad"]
    assert in_size <= in_pad0

    tb_eff, b8 = _pick_batch_tile(B, tb)
    xp = x
    if (b8, in_pad0) != (B, in_size):
        xp = jnp.pad(x, ((0, b8 - B), (0, in_pad0 - in_size)))   # single pad for the whole net

    vmem_limit = int(_vmem_capacity_bytes() * 0.8)   # per-generation limit w/ headroom
    group_budget = int(vmem_limit * 0.7)             # leave room for x/out pipelining
    if interm_dtype is None:
        interm_dtype = layers[0]["w"].dtype          # bf16 params -> bf16 intermediates

    # Greedily fuse consecutive layers whose packed weights co-reside in VMEM.
    groups, cur = [], []
    for L in layers:
        cand = cur + [L]
        if cur and _group_vmem_bytes(cand, tb_eff, 4) > group_budget:
            groups.append(cur)
            cur = [L]
        else:
            cur = cand
    groups.append(cur)

    h = xp
    for gi, group in enumerate(groups):
        last = gi == len(groups) - 1
        out_dtype = jnp.float32 if last else interm_dtype
        if len(group) == 1 and _group_vmem_bytes(group, tb_eff, 4) > group_budget:
            # Layer too wide to keep its whole weight slab resident -> tiled fallback.
            h = _maxout_layer_tiled_forward(h, group[0], tb=tb_eff, tn=tn,
                                            vmem_limit=vmem_limit, out_dtype=out_dtype)
            if last:
                h = log_softmax_forward(h, n_classes, tb=tb_eff, vmem_limit=vmem_limit)
        else:
            h = _maxout_group_forward(h, group, tb=tb_eff, vmem_limit=vmem_limit,
                                      out_dtype=out_dtype, with_logsoftmax=last,
                                      n_classes=n_classes)
    return h[:B, :n_classes]


# Pure-JAX reference of the exact PyTorch forward semantics (original layouts).
def maxout_net_reference(x, torch_params):
    out = x
    for w, b in torch_params["maxout"]:
        out = (jnp.einsum("bi,oki->bok", out, w) + b[None]).max(axis=-1)
    lw, lb = torch_params["linear"]
    out = out @ lw.T + lb
    return jax.nn.log_softmax(out, axis=1)


if __name__ == "__main__":
    B = 16
    input_size, hidden_sizes, output_size, K = 32, [64, 48], 10, 4

    key = jax.random.PRNGKey(0)
    xkey, pkey = jax.random.split(key)
    x = jax.random.normal(xkey, (B, input_size), jnp.float32)
    params, torch_params = build_maxout_net(
        pkey, input_size, hidden_sizes, output_size, K, zero_bias=False)

    out = jax.block_until_ready(maxout_net_forward(x, params))
    ref = maxout_net_reference(x, torch_params)

    assert out.shape == (B, output_size)
    err = float(jnp.max(jnp.abs(out - ref)))
    assert err < 1e-3, err
    print("KERNEL_OK")
</pallas_src>

<mosaic_0001>
module attributes {stable_mosaic.version = 11 : i64} {
  func.func @_group_kernel(%arg0: i32, %arg1: memref<8x128xf32, #tpu.memory_space<vmem>>, %arg2: memref<4x128x128xf32, #tpu.memory_space<vmem>>, %arg3: memref<4x1x128xf32, #tpu.memory_space<vmem>>, %arg4: memref<4x128x128xf32, #tpu.memory_space<vmem>>, %arg5: memref<4x1x128xf32, #tpu.memory_space<vmem>>, %arg6: memref<1x128x128xf32, #tpu.memory_space<vmem>>, %arg7: memref<1x1x128xf32, #tpu.memory_space<vmem>>, %arg8: memref<8x128xf32, #tpu.memory_space<vmem>>) attributes {dimension_semantics = [#tpu.dimension_semantics<parallel>], iteration_bounds = array<i64: 2>, scalar_prefetch = 0 : i64, scratch_operands = 0 : i64, tpu.core_type = #tpu.core_type<tc>, window_params = [{transform_indices = @transform_0, window_bounds = array<i64: 8, 128>}, {pipeline_mode = #tpu.pipeline_mode<synchronous>, transform_indices = @transform_1, window_bounds = array<i64: 4, 128, 128>}, {pipeline_mode = #tpu.pipeline_mode<synchronous>, transform_indices = @transform_2, window_bounds = array<i64: 4, 1, 128>}, {pipeline_mode = #tpu.pipeline_mode<synchronous>, transform_indices = @transform_3, window_bounds = array<i64: 4, 128, 128>}, {pipeline_mode = #tpu.pipeline_mode<synchronous>, transform_indices = @transform_4, window_bounds = array<i64: 4, 1, 128>}, {pipeline_mode = #tpu.pipeline_mode<synchronous>, transform_indices = @transform_5, window_bounds = array<i64: 1, 128, 128>}, {pipeline_mode = #tpu.pipeline_mode<synchronous>, transform_indices = @transform_6, window_bounds = array<i64: 1, 1, 128>}, {transform_indices = @transform_7, window_bounds = array<i64: 8, 128>}]} {
    %c0 = arith.constant 0 : index
    %c0_0 = arith.constant 0 : index
    %0 = vector.load %arg1[%c0, %c0_0] : memref<8x128xf32, #tpu.memory_space<vmem>>, vector<8x128xf32>
    %c0_1 = arith.constant 0 : index
    %c0_2 = arith.constant 0 : index
    %c0_3 = arith.constant 0 : index
    %1 = vector.load %arg2[%c0_1, %c0_2, %c0_3] : memref<4x128x128xf32, #tpu.memory_space<vmem>>, vector<1x128x128xf32>
    %2 = vector.shape_cast %1 : vector<1x128x128xf32> to vector<128x128xf32>
    %cst = arith.constant dense<0.000000e+00> : vector<8x128xf32>
    %3 = tpu.matmul %0, %2, %cst {dimension_numbers = #tpu.dot_dimension_numbers<[1], [0], [0], [1], [0, 0, 1, 1], [], []>} : vector<8x128xf32>, vector<128x128xf32>, vector<8x128xf32> -> vector<8x128xf32>
    %c0_4 = arith.constant 0 : index
    %c0_5 = arith.constant 0 : index
    %c0_6 = arith.constant 0 : index
    %4 = vector.load %arg3[%c0_4, %c0_5, %c0_6] : memref<4x1x128xf32, #tpu.memory_space<vmem>>, vector<1x1x128xf32>
    %5 = vector.shape_cast %4 : vector<1x1x128xf32> to vector<1x128xf32>
    %6 = vector.broadcast %5 : vector<1x128xf32> to vector<8x128xf32>
    %7 = arith.addf %3, %6 : vector<8x128xf32>
    %c1 = arith.constant 1 : index
    %c0_7 = arith.constant 0 : index
    %c0_8 = arith.constant 0 : index
    %8 = vector.load %arg2[%c1, %c0_7, %c0_8] : memref<4x128x128xf32, #tpu.memory_space<vmem>>, vector<1x128x128xf32>
    %9 = vector.shape_cast %8 : vector<1x128x128xf32> to vector<128x128xf32>
    %cst_9 = arith.constant dense<0.000000e+00> : vector<8x128xf32>
    %10 = tpu.matmul %0, %9, %cst_9 {dimension_numbers = #tpu.dot_dimension_numbers<[1], [0], [0], [1], [0, 0, 1, 1], [], []>} : vector<8x128xf32>, vector<128x128xf32>, vector<8x128xf32> -> vector<8x128xf32>
    %c1_10 = arith.constant 1 : index
    %c0_11 = arith.constant 0 : index
    %c0_12 = arith.constant 0 : index
    %11 = vector.load %arg3[%c1_10, %c0_11, %c0_12] : memref<4x1x128xf32, #tpu.memory_space<vmem>>, vector<1x1x128xf32>
    %12 = vector.shape_cast %11 : vector<1x1x128xf32> to vector<1x128xf32>
    %13 = vector.broadcast %12 : vector<1x128xf32> to vector<8x128xf32>
    %14 = arith.addf %10, %13 : vector<8x128xf32>
    %15 = arith.maximumf %7, %14 : vector<8x128xf32>
    %c2 = arith.constant 2 : index
    %c0_13 = arith.constant 0 : index
    %c0_14 = arith.constant 0 : index
    %16 = vector.load %arg2[%c2, %c0_13, %c0_14] : memref<4x128x128xf32, #tpu.memory_space<vmem>>, vector<1x128x128xf32>
    %17 = vector.shape_cast %16 : vector<1x128x128xf32> to vector<128x128xf32>
    %cst_15 = arith.constant dense<0.000000e+00> : vector<8x128xf32>
    %18 = tpu.matmul %0, %17, %cst_15 {dimension_numbers = #tpu.dot_dimension_numbers<[1], [0], [0], [1], [0, 0, 1, 1], [], []>} : vector<8x128xf32>, vector<128x128xf32>, vector<8x128xf32> -> vector<8x128xf32>
    %c2_16 = arith.constant 2 : index
    %c0_17 = arith.constant 0 : index
    %c0_18 = arith.constant 0 : index
    %19 = vector.load %arg3[%c2_16, %c0_17, %c0_18] : memref<4x1x128xf32, #tpu.memory_space<vmem>>, vector<1x1x128xf32>
    %20 = vector.shape_cast %19 : vector<1x1x128xf32> to vector<1x128xf32>
    %21 = vector.broadcast %20 : vector<1x128xf32> to vector<8x128xf32>
    %22 = arith.addf %18, %21 : vector<8x128xf32>
    %23 = arith.maximumf %15, %22 : vector<8x128xf32>
    %c3 = arith.constant 3 : index
    %c0_19 = arith.constant 0 : index
    %c0_20 = arith.constant 0 : index
    %24 = vector.load %arg2[%c3, %c0_19, %c0_20] : memref<4x128x128xf32, #tpu.memory_space<vmem>>, vector<1x128x128xf32>
    %25 = vector.shape_cast %24 : vector<1x128x128xf32> to vector<128x128xf32>
    %cst_21 = arith.constant dense<0.000000e+00> : vector<8x128xf32>
    %26 = tpu.matmul %0, %25, %cst_21 {dimension_numbers = #tpu.dot_dimension_numbers<[1], [0], [0], [1], [0, 0, 1, 1], [], []>} : vector<8x128xf32>, vector<128x128xf32>, vector<8x128xf32> -> vector<8x128xf32>
    %c3_22 = arith.constant 3 : index
    %c0_23 = arith.constant 0 : index
    %c0_24 = arith.constant 0 : index
    %27 = vector.load %arg3[%c3_22, %c0_23, %c0_24] : memref<4x1x128xf32, #tpu.memory_space<vmem>>, vector<1x1x128xf32>
    %28 = vector.shape_cast %27 : vector<1x1x128xf32> to vector<1x128xf32>
    %29 = vector.broadcast %28 : vector<1x128xf32> to vector<8x128xf32>
    %30 = arith.addf %26, %29 : vector<8x128xf32>
    %31 = arith.maximumf %23, %30 : vector<8x128xf32>
    %c0_25 = arith.constant 0 : index
    %c0_26 = arith.constant 0 : index
    %c0_27 = arith.constant 0 : index
    %32 = vector.load %arg4[%c0_25, %c0_26, %c0_27] : memref<4x128x128xf32, #tpu.memory_space<vmem>>, vector<1x128x128xf32>
    %33 = vector.shape_cast %32 : vector<1x128x128xf32> to vector<128x128xf32>
    %cst_28 = arith.constant dense<0.000000e+00> : vector<8x128xf32>
    %34 = tpu.matmul %31, %33, %cst_28 {dimension_numbers = #tpu.dot_dimension_numbers<[1], [0], [0], [1], [0, 0, 1, 1], [], []>} : vector<8x128xf32>, vector<128x128xf32>, vector<8x128xf32> -> vector<8x128xf32>
    %c0_29 = arith.constant 0 : index
    %c0_30 = arith.constant 0 : index
    %c0_31 = arith.constant 0 : index
    %35 = vector.load %arg5[%c0_29, %c0_30, %c0_31] : memref<4x1x128xf32, #tpu.memory_space<vmem>>, vector<1x1x128xf32>
    %36 = vector.shape_cast %35 : vector<1x1x128xf32> to vector<1x128xf32>
    %37 = vector.broadcast %36 : vector<1x128xf32> to vector<8x128xf32>
    %38 = arith.addf %34, %37 : vector<8x128xf32>
    %c1_32 = arith.constant 1 : index
    %c0_33 = arith.constant 0 : index
    %c0_34 = arith.constant 0 : index
    %39 = vector.load %arg4[%c1_32, %c0_33, %c0_34] : memref<4x128x128xf32, #tpu.memory_space<vmem>>, vector<1x128x128xf32>
    %40 = vector.shape_cast %39 : vector<1x128x128xf32> to vector<128x128xf32>
    %cst_35 = arith.constant dense<0.000000e+00> : vector<8x128xf32>
    %41 = tpu.matmul %31, %40, %cst_35 {dimension_numbers = #tpu.dot_dimension_numbers<[1], [0], [0], [1], [0, 0, 1, 1], [], []>} : vector<8x128xf32>, vector<128x128xf32>, vector<8x128xf32> -> vector<8x128xf32>
    %c1_36 = arith.constant 1 : index
    %c0_37 = arith.constant 0 : index
    %c0_38 = arith.constant 0 : index
    %42 = vector.load %arg5[%c1_36, %c0_37, %c0_38] : memref<4x1x128xf32, #tpu.memory_space<vmem>>, vector<1x1x128xf32>
    %43 = vector.shape_cast %42 : vector<1x1x128xf32> to vector<1x128xf32>
    %44 = vector.broadcast %43 : vector<1x128xf32> to vector<8x128xf32>
    %45 = arith.addf %41, %44 : vector<8x128xf32>
    %46 = arith.maximumf %38, %45 : vector<8x128xf32>
    %c2_39 = arith.constant 2 : index
    %c0_40 = arith.constant 0 : index
    %c0_41 = arith.constant 0 : index
    %47 = vector.load %arg4[%c2_39, %c0_40, %c0_41] : memref<4x128x128xf32, #tpu.memory_space<vmem>>, vector<1x128x128xf32>
    %48 = vector.shape_cast %47 : vector<1x128x128xf32> to vector<128x128xf32>
    %cst_42 = arith.constant dense<0.000000e+00> : vector<8x128xf32>
    %49 = tpu.matmul %31, %48, %cst_42 {dimension_numbers = #tpu.dot_dimension_numbers<[1], [0], [0], [1], [0, 0, 1, 1], [], []>} : vector<8x128xf32>, vector<128x128xf32>, vector<8x128xf32> -> vector<8x128xf32>
    %c2_43 = arith.constant 2 : index
    %c0_44 = arith.constant 0 : index
    %c0_45 = arith.constant 0 : index
    %50 = vector.load %arg5[%c2_43, %c0_44, %c0_45] : memref<4x1x128xf32, #tpu.memory_space<vmem>>, vector<1x1x128xf32>
    %51 = vector.shape_cast %50 : vector<1x1x128xf32> to vector<1x128xf32>
    %52 = vector.broadcast %51 : vector<1x128xf32> to vector<8x128xf32>
    %53 = arith.addf %49, %52 : vector<8x128xf32>
    %54 = arith.maximumf %46, %53 : vector<8x128xf32>
    %c3_46 = arith.constant 3 : index
    %c0_47 = arith.constant 0 : index
    %c0_48 = arith.constant 0 : index
    %55 = vector.load %arg4[%c3_46, %c0_47, %c0_48] : memref<4x128x128xf32, #tpu.memory_space<vmem>>, vector<1x128x128xf32>
    %56 = vector.shape_cast %55 : vector<1x128x128xf32> to vector<128x128xf32>
    %cst_49 = arith.constant dense<0.000000e+00> : vector<8x128xf32>
    %57 = tpu.matmul %31, %56, %cst_49 {dimension_numbers = #tpu.dot_dimension_numbers<[1], [0], [0], [1], [0, 0, 1, 1], [], []>} : vector<8x128xf32>, vector<128x128xf32>, vector<8x128xf32> -> vector<8x128xf32>
    %c3_50 = arith.constant 3 : index
    %c0_51 = arith.constant 0 : index
    %c0_52 = arith.constant 0 : index
    %58 = vector.load %arg5[%c3_50, %c0_51, %c0_52] : memref<4x1x128xf32, #tpu.memory_space<vmem>>, vector<1x1x128xf32>
    %59 = vector.shape_cast %58 : vector<1x1x128xf32> to vector<1x128xf32>
    %60 = vector.broadcast %59 : vector<1x128xf32> to vector<8x128xf32>
    %61 = arith.addf %57, %60 : vector<8x128xf32>
    %62 = arith.maximumf %54, %61 : vector<8x128xf32>
    %c0_53 = arith.constant 0 : index
    %c0_54 = arith.constant 0 : index
    %c0_55 = arith.constant 0 : index
    %63 = vector.load %arg6[%c0_53, %c0_54, %c0_55] : memref<1x128x128xf32, #tpu.memory_space<vmem>>, vector<1x128x128xf32>
    %64 = vector.shape_cast %63 : vector<1x128x128xf32> to vector<128x128xf32>
    %cst_56 = arith.constant dense<0.000000e+00> : vector<8x128xf32>
    %65 = tpu.matmul %62, %64, %cst_56 {dimension_numbers = #tpu.dot_dimension_numbers<[1], [0], [0], [1], [0, 0, 1, 1], [], []>} : vector<8x128xf32>, vector<128x128xf32>, vector<8x128xf32> -> vector<8x128xf32>
    %c0_57 = arith.constant 0 : index
    %c0_58 = arith.constant 0 : index
    %c0_59 = arith.constant 0 : index
    %66 = vector.load %arg7[%c0_57, %c0_58, %c0_59] : memref<1x1x128xf32, #tpu.memory_space<vmem>>, vector<1x1x128xf32>
    %67 = vector.shape_cast %66 : vector<1x1x128xf32> to vector<1x128xf32>
    %68 = vector.broadcast %67 : vector<1x128xf32> to vector<8x128xf32>
    %69 = arith.addf %65, %68 : vector<8x128xf32>
    %70 = tpu.iota {dimensions = array<i32: 1>} : vector<8x128xi32>
    %c10_i32 = arith.constant 10 : i32
    %71 = vector.broadcast %c10_i32 : i32 to vector<8x128xi32>
    %72 = arith.cmpi slt, %70, %71 : vector<8x128xi32>
    %cst_60 = arith.constant 0xFF800000 : f32
    %73 = vector.broadcast %cst_60 : f32 to vector<8x128xf32>
    %74 = arith.select %72, %69, %73 : vector<8x128xi1>, vector<8x128xf32>
    %cst_61 = arith.constant dense<0xFF800000> : vector<8xf32>
    %75 = vector.multi_reduction <maximumf>, %74, %cst_61 [1] : vector<8x128xf32> to vector<8xf32>
    %76 = vector.shape_cast %75 : vector<8xf32> to vector<8x1xf32>
    %77 = vector.broadcast %76 : vector<8x1xf32> to vector<8x128xf32>
    %78 = arith.subf %74, %77 : vector<8x128xf32>
    %79 = math.exp %78 : vector<8x128xf32>
    %cst_62 = arith.constant dense<0.000000e+00> : vector<8xf32>
    %80 = vector.multi_reduction <add>, %79, %cst_62 [1] : vector<8x128xf32> to vector<8xf32>
    %81 = vector.shape_cast %80 : vector<8xf32> to vector<8x1xf32>
    %82 = math.log %81 : vector<8x1xf32>
    %83 = arith.addf %82, %76 : vector<8x1xf32>
    %84 = vector.broadcast %83 : vector<8x1xf32> to vector<8x128xf32>
    %85 = arith.subf %74, %84 : vector<8x128xf32>
    %c0_63 = arith.constant 0 : index
    %c0_64 = arith.constant 0 : index
    %86 = vector.load %arg8[%c0_63, %c0_64] : memref<8x128xf32, #tpu.memory_space<vmem>>, vector<8x128xf32>
    tpu.vector_store %arg8[%c0_63, %c0_64], %85 {strides = array<i32>} : memref<8x128xf32, #tpu.memory_space<vmem>>, vector<8x128xf32>,
    return
  }
  func.func @transform_0(%arg0: i32) -> (i32, i32) {
    %c0_i32 = arith.constant 0 : i32
    %c0_i32_0 = arith.constant 0 : i32
    return %arg0, %c0_i32 : i32, i32
  }
  func.func @transform_1(%arg0: i32) -> (i32, i32, i32) {
    %c0_i32 = arith.constant 0 : i32
    %c0_i32_0 = arith.constant 0 : i32
    %c0_i32_1 = arith.constant 0 : i32
    %c0_i32_2 = arith.constant 0 : i32
    return %c0_i32, %c0_i32_0, %c0_i32_1 : i32, i32, i32
  }
  func.func @transform_2(%arg0: i32) -> (i32, i32, i32) {
    %c0_i32 = arith.constant 0 : i32
    %c0_i32_0 = arith.constant 0 : i32
    %c0_i32_1 = arith.constant 0 : i32
    %c0_i32_2 = arith.constant 0 : i32
    return %c0_i32, %c0_i32_0, %c0_i32_1 : i32, i32, i32
  }
  func.func @transform_3(%arg0: i32) -> (i32, i32, i32) {
    %c0_i32 = arith.constant 0 : i32
    %c0_i32_0 = arith.constant 0 : i32
    %c0_i32_1 = arith.constant 0 : i32
    %c0_i32_2 = arith.constant 0 : i32
    return %c0_i32, %c0_i32_0, %c0_i32_1 : i32, i32, i32
  }
  func.func @transform_4(%arg0: i32) -> (i32, i32, i32) {
    %c0_i32 = arith.constant 0 : i32
    %c0_i32_0 = arith.constant 0 : i32
    %c0_i32_1 = arith.constant 0 : i32
    %c0_i32_2 = arith.constant 0 : i32
    return %c0_i32, %c0_i32_0, %c0_i32_1 : i32, i32, i32
  }
  func.func @transform_5(%arg0: i32) -> (i32, i32, i32) {
    %c0_i32 = arith.constant 0 : i32
    %c0_i32_0 = arith.constant 0 : i32
    %c0_i32_1 = arith.constant 0 : i32
    %c0_i32_2 = arith.constant 0 : i32
    return %c0_i32, %c0_i32_0, %c0_i32_1 : i32, i32, i32
  }
  func.func @transform_6(%arg0: i32) -> (i32, i32, i32) {
    %c0_i32 = arith.constant 0 : i32
    %c0_i32_0 = arith.constant 0 : i32
    %c0_i32_1 = arith.constant 0 : i32
    %c0_i32_2 = arith.constant 0 : i32
    return %c0_i32, %c0_i32_0, %c0_i32_1 : i32, i32, i32
  }
  func.func @transform_7(%arg0: i32) -> (i32, i32) {
    %c0_i32 = arith.constant 0 : i32
    %c0_i32_0 = arith.constant 0 : i32
    return %arg0, %c0_i32 : i32, i32
  }
}

</mosaic_0001>

<llo_original>
// kernel: tpu_custom_call.1
$region0: #{tpu_custom_call.1}
  #allocation0 [shape = 'u32[]', space=smem, size = 0x4, offset = 0x4, fixed_abs, tag = 'smem constant byte address 0x4 - core index']
  #allocation1 [shape = 'u32[72,128]{1,0:T(1,128)}', space=vmem, size = 0x9000, scoped, tag = 'internal scratch']
  %s0 = inlined_call_operand.hbm [shape: f32[16,128], index: 0, kind: input, shape index: {}]
  %s1 = inlined_call_operand.hbm [shape: f32[4,128,128], index: 1, kind: input, shape index: {}]
  %s2 = inlined_call_operand.hbm [shape: f32[4,1,128], index: 2, kind: input, shape index: {}]
  %s3 = inlined_call_operand.hbm [shape: f32[4,128,128], index: 3, kind: input, shape index: {}]
  %s4 = inlined_call_operand.hbm [shape: f32[4,1,128], index: 4, kind: input, shape index: {}]
  %s5 = inlined_call_operand.hbm [shape: f32[1,128,128], index: 5, kind: input, shape index: {}]
  %s6 = inlined_call_operand.vmem [shape: f32[1,1,128], index: 6, kind: input, shape index: {}]
  %s7 = inlined_call_operand.hbm [shape: f32[16,128], index: 7, kind: output, shape index: {}]
  %s8 = sld [smem:[#allocation0]]
  $region85: #{tpu_custom_call.1} parent=0
    _
  %s10 = ssub.s32 1, %s8
  %s11 = scalar_select 0, %s10, %s8
  $region1: #{tpu_custom_call.1} parent=0
    #allocation2 [shape = 'u8[8192]{0}', space=vmem, size = 0x2000, scoped, tag = 'input window, operand 0']
    #allocation3 [shape = 's32[2]{0}', space=sflag, size = 0x8, scoped, tag = 'scoped memory for tpu_custom_call.1']
    #allocation4 [shape = 's32[2]{0}', space=sflag, size = 0x8, scoped, tag = 'scoped memory for tpu_custom_call.1']
    #allocation5 [shape = 'u8[262144]{0}', space=vmem, size = 0x40000, scoped, tag = 'input window, operand 1, single buffered']
    #allocation6 [shape = 's32[1]{0}', space=sflag, size = 0x4, scoped, tag = 'scoped memory for tpu_custom_call.1']
    #allocation7 [shape = 'u8[2048]{0}', space=vmem, size = 0x800, scoped, tag = 'input window, operand 2, single buffered']
    #allocation8 [shape = 'u8[262144]{0}', space=vmem, size = 0x40000, scoped, tag = 'input window, operand 3, single buffered']
    #allocation9 [shape = 's32[1]{0}', space=sflag, size = 0x4, scoped, tag = 'scoped memory for tpu_custom_call.1']
    #allocation10 [shape = 'u8[2048]{0}', space=vmem, size = 0x800, scoped, tag = 'input window, operand 4, single buffered']
    #allocation11 [shape = 'u8[65536]{0}', space=vmem, size = 0x10000, scoped, tag = 'input window, operand 5, single buffered']
    #allocation12 [shape = 's32[1]{0}', space=sflag, size = 0x4, scoped, tag = 'scoped memory for tpu_custom_call.1']
    #allocation13 [shape = 'u8[8192]{0}', space=vmem, size = 0x2000, scoped, tag = 'output window, operand 0']
    %12 = vsyncpa [#allocation3], 0
    %s13 = scalar_lea.sflag [#allocation3], 1
    %14 = vsyncpa %s13, 0
    %15 = vsyncpa [#allocation6], 0
    %16 = vsyncpa [#allocation9], 0
    %17 = vsyncpa [#allocation12], 0
    %18 = vsyncpa [#allocation4], 0
    %s19 = scalar_lea.sflag [#allocation4], 1
    %20 = vsyncpa %s19, 0
    loop: start=0, step=1, limit=4
    $region2: #{tpu_custom_call.1} parent=1 // loop_pre_header
      _
    $region3: #{tpu_custom_call.1} parent=1 // loop_header
      %s22 = sphi 0, %s26
      %p23 = scmp.ge.s32.totalorder %s22, 4
      %s32 = sphi 0, %s34
      %s35 = sphi 0, %s32
      %s36 = sphi 0, %s35
      %s52 = sphi 0, %s36
      %s56 = sphi 0, %s56
      %s58 = sphi 0, %s56
      %s59 = sphi 0, %s58
      %s73 = sphi 0, %s59
      %s77 = sphi 0, %s77
      %s79 = sphi 0, %s77
      %s80 = sphi 0, %s79
      %s94 = sphi 0, %s80
      %s98 = sphi 0, %s98
      %s100 = sphi 0, %s98
      %s101 = sphi 0, %s100
      %s115 = sphi 0, %s101
      %s119 = sphi 0, %s119
      %s121 = sphi 0, %s119
      %s122 = sphi 0, %s121
      %s136 = sphi 0, %s122
      %s140 = sphi 0, %s140
      %s142 = sphi 0, %s140
      %s143 = sphi 0, %s142
      %s157 = sphi 0, %s143
      %s161 = sphi 0, %s161
      %s163 = sphi 0, %s161
      %s164 = sphi 0, %s163
      %s178 = sphi 0, %s164
      %s184 = sphi 0, %s186
      %s187 = sphi 0, %s184
      %s188 = sphi 0, %s187
      %s204 = sphi 0, %s188
    $region4: #{tpu_custom_call.1} parent=1 // loop_header_branch
      %25 = sbr.rel (%p23) target = $region8
    $region5: #{tpu_custom_call.1} parent=1 // loop_body
      %s27 = ssub.s32 %s22, 1
      %s28 = ssub.s32 %s22, 2
      %s29 = sadd.s32 %s22, 1
      %s30 = ssub.s32 %s22, %s29
      %p31 = scmp.eq.s32.totalorder %s30, 0
      %s33 = sadd.s32 %s32, 1
      %s34 = scalar_select %p31, %s32, %s33
      %p37 = pneg %p31
      %p38 = scmp.eq.s32.totalorder %s22, 1
      %p39 = por %p37, %p38
      %p40 = scmp.ne.s32.totalorder %s32, %s35
      %p41 = scmp.eq.s32.totalorder %s22, 0
      %p42 = por %p40, %p41
      %p43 = scmp.ne.s32.totalorder %s32, %s35
      %p44 = scmp.eq.s32.totalorder %s27, 1
      %p45 = por %p43, %p44
      %p46 = scmp.ne.s32.totalorder %s35, %s36
      %p47 = scmp.eq.s32.totalorder %s27, 0
      %p48 = por %p46, %p47
      %p49 = scmp.ne.s32.totalorder %s35, %s36
      %p50 = scmp.eq.s32.totalorder %s28, 1
      %p51 = por %p49, %p50
      %p53 = scmp.ne.s32.totalorder %s36, %s52
      %p54 = scmp.eq.s32.totalorder %s28, 0
      %p55 = por %p53, %p54
      %s57 = sadd.s32 %s56, 1
      %p60 = scmp.eq.s32.totalorder %s22, 1
      %p61 = scmp.ne.s32.totalorder %s56, %s58
      %p62 = scmp.eq.s32.totalorder %s22, 0
      %p63 = por %p61, %p62
      %p64 = scmp.ne.s32.totalorder %s56, %s58
      %p65 = scmp.eq.s32.totalorder %s27, 1
      %p66 = por %p64, %p65
      %p67 = scmp.ne.s32.totalorder %s58, %s59
      %p68 = scmp.eq.s32.totalorder %s27, 0
      %p69 = por %p67, %p68
      %p70 = scmp.ne.s32.totalorder %s58, %s59
      %p71 = scmp.eq.s32.totalorder %s28, 1
      %p72 = por %p70, %p71
      %p74 = scmp.ne.s32.totalorder %s59, %s73
      %p75 = scmp.eq.s32.totalorder %s28, 0
      %p76 = por %p74, %p75
      %s78 = sadd.s32 %s77, 1
      %p81 = scmp.eq.s32.totalorder %s22, 1
      %p82 = scmp.ne.s32.totalorder %s77, %s79
      %p83 = scmp.eq.s32.totalorder %s22, 0
      %p84 = por %p82, %p83
      %p85 = scmp.ne.s32.totalorder %s77, %s79
      %p86 = scmp.eq.s32.totalorder %s27, 1
      %p87 = por %p85, %p86
      %p88 = scmp.ne.s32.totalorder %s79, %s80
      %p89 = scmp.eq.s32.totalorder %s27, 0
      %p90 = por %p88, %p89
      %p91 = scmp.ne.s32.totalorder %s79, %s80
      %p92 = scmp.eq.s32.totalorder %s28, 1
      %p93 = por %p91, %p92
      %p95 = scmp.ne.s32.totalorder %s80, %s94
      %p96 = scmp.eq.s32.totalorder %s28, 0
      %p97 = por %p95, %p96
      %s99 = sadd.s32 %s98, 1
      %p102 = scmp.eq.s32.totalorder %s22, 1
      %p103 = scmp.ne.s32.totalorder %s98, %s100
      %p104 = scmp.eq.s32.totalorder %s22, 0
      %p105 = por %p103, %p104
      %p106 = scmp.ne.s32.totalorder %s98, %s100
      %p107 = scmp.eq.s32.totalorder %s27, 1
      %p108 = por %p106, %p107
      %p109 = scmp.ne.s32.totalorder %s100, %s101
      %p110 = scmp.eq.s32.totalorder %s27, 0
      %p111 = por %p109, %p110
      %p112 = scmp.ne.s32.totalorder %s100, %s101
      %p113 = scmp.eq.s32.totalorder %s28, 1
      %p114 = por %p112, %p113
      %p116 = scmp.ne.s32.totalorder %s101, %s115
      %p117 = scmp.eq.s32.totalorder %s28, 0
      %p118 = por %p116, %p117
      %s120 = sadd.s32 %s119, 1
      %p123 = scmp.eq.s32.totalorder %s22, 1
      %p124 = scmp.ne.s32.totalorder %s119, %s121
      %p125 = scmp.eq.s32.totalorder %s22, 0
      %p126 = por %p124, %p125
      %p127 = scmp.ne.s32.totalorder %s119, %s121
      %p128 = scmp.eq.s32.totalorder %s27, 1
      %p129 = por %p127, %p128
      %p130 = scmp.ne.s32.totalorder %s121, %s122
      %p131 = scmp.eq.s32.totalorder %s27, 0
      %p132 = por %p130, %p131
      %p133 = scmp.ne.s32.totalorder %s121, %s122
      %p134 = scmp.eq.s32.totalorder %s28, 1
      %p135 = por %p133, %p134
      %p137 = scmp.ne.s32.totalorder %s122, %s136
      %p138 = scmp.eq.s32.totalorder %s28, 0
      %p139 = por %p137, %p138
      %s141 = sadd.s32 %s140, 1
      %p144 = scmp.eq.s32.totalorder %s22, 1
      %p145 = scmp.ne.s32.totalorder %s140, %s142
      %p146 = scmp.eq.s32.totalorder %s22, 0
      %p147 = por %p145, %p146
      %p148 = scmp.ne.s32.totalorder %s140, %s142
      %p149 = scmp.eq.s32.totalorder %s27, 1
      %p150 = por %p148, %p149
      %p151 = scmp.ne.s32.totalorder %s142, %s143
      %p152 = scmp.eq.s32.totalorder %s27, 0
      %p153 = por %p151, %p152
      %p154 = scmp.ne.s32.totalorder %s142, %s143
      %p155 = scmp.eq.s32.totalorder %s28, 1
      %p156 = por %p154, %p155
      %p158 = scmp.ne.s32.totalorder %s143, %s157
      %p159 = scmp.eq.s32.totalorder %s28, 0
      %p160 = por %p158, %p159
      %s162 = sadd.s32 %s161, 1
      %p165 = scmp.eq.s32.totalorder %s22, 1
      %p166 = scmp.ne.s32.totalorder %s161, %s163
      %p167 = scmp.eq.s32.totalorder %s22, 0
      %p168 = por %p166, %p167
      %p169 = scmp.ne.s32.totalorder %s161, %s163
      %p170 = scmp.eq.s32.totalorder %s27, 1
      %p171 = por %p169, %p170
      %p172 = scmp.ne.s32.totalorder %s163, %s164
      %p173 = scmp.eq.s32.totalorder %s27, 0
      %p174 = por %p172, %p173
      %p175 = scmp.ne.s32.totalorder %s163, %s164
      %p176 = scmp.eq.s32.totalorder %s28, 1
      %p177 = por %p175, %p176
      %p179 = scmp.ne.s32.totalorder %s164, %s178
      %p180 = scmp.eq.s32.totalorder %s28, 0
      %p181 = por %p179, %p180
      %s182 = ssub.s32 %s22, %s29
      %p183 = scmp.eq.s32.totalorder %s182, 0
      %s185 = sadd.s32 %s184, 1
      %s186 = scalar_select %p183, %s184, %s185
      %p189 = pneg %p183
      %p190 = scmp.eq.s32.totalorder %s22, 1
      %p191 = por %p189, %p190
      %p192 = scmp.ne.s32.totalorder %s184, %s187
      %p193 = scmp.eq.s32.totalorder %s22, 0
      %p194 = por %p192, %p193
      %p195 = scmp.ne.s32.totalorder %s184, %s187
      %p196 = scmp.eq.s32.totalorder %s27, 1
      %p197 = por %p195, %p196
      %p198 = scmp.ne.s32.totalorder %s187, %s188
      %p199 = scmp.eq.s32.totalorder %s27, 0
      %p200 = por %p198, %p199
      %p201 = scmp.ne.s32.totalorder %s187, %s188
      %p202 = scmp.eq.s32.totalorder %s28, 1
      %p203 = por %p201, %p202
      %p205 = scmp.ne.s32.totalorder %s188, %s204
      %p206 = scmp.eq.s32.totalorder %s28, 0
      %p207 = por %p205, %p206
      %p208 = scmp.le.s32.totalorder 1, %s22
      %p209 = scmp.lt.s32.totalorder %s22, 3
      %p210 = pnand %p208, %p209
      %p211 = pneg %p210
      // Predicated region
      $region9: #{tpu_custom_call.1} parent=5 // pred_check
        _
      $region10: #{tpu_custom_call.1} parent=5 // pred_check_branch
        %213 = sbr.rel (%p210) target = $region12
      $region11: #{tpu_custom_call.1} parent=5 // pred_region
        %s214 = ssub.s32 %s22, 1
        // Predicated region
        $region13: #{tpu_custom_call.1} parent=11 // pred_check
          %p215 = pneg %p69
        $region14: #{tpu_custom_call.1} parent=11 // pred_check_branch
          %217 = sbr.rel (%p215) target = $region16
        $region15: #{tpu_custom_call.1} parent=11 // pred_region
          %219 = vsyncadd [#allocation6], 0
          %s220 = sshll.u32 %s1, 4
          %s221 = int_to_ptr.hbm [resolvable:$true] %s220
          %s222 = sshll.u32 [#allocation5], 4
          %s223 = int_to_ptr.vmem [resolvable:$true] %s222
          %228 = dma.hbm_to_vmem [thread:$0]  %s221, 8192, %s223, [#allocation6], 128, 128, 8
        $region16: #{tpu_custom_call.1} parent=11 // pred_fallthru
          _
        // Predicated region
        $region17: #{tpu_custom_call.1} parent=11 // pred_check
          %p229 = pneg %p90
        $region18: #{tpu_custom_call.1} parent=11 // pred_check_branch
          %231 = sbr.rel (%p229) target = $region20
        $region19: #{tpu_custom_call.1} parent=11 // pred_region
          %233 = vsyncadd [#allocation6], 0
          %s234 = sshll.u32 %s2, 4
          %s235 = int_to_ptr.hbm [resolvable:$true] %s234
          %s236 = sshll.u32 [#allocation7], 4
          %s237 = int_to_ptr.vmem [resolvable:$true] %s236
          %242 = dma.hbm_to_vmem [thread:$0]  %s235, 64, %s237, [#allocation6], 16, 16, 1
        $region20: #{tpu_custom_call.1} parent=11 // pred_fallthru
          _
        // Predicated region
        $region21: #{tpu_custom_call.1} parent=11 // pred_check
          %p243 = pneg %p111
        $region22: #{tpu_custom_call.1} parent=11 // pred_check_branch
          %245 = sbr.rel (%p243) target = $region24
        $region23: #{tpu_custom_call.1} parent=11 // pred_region
          %247 = vsyncadd [#allocation9], 0
          %s248 = sshll.u32 %s3, 4
          %s249 = int_to_ptr.hbm [resolvable:$true] %s248
          %s250 = sshll.u32 [#allocation8], 4
          %s251 = int_to_ptr.vmem [resolvable:$true] %s250
          %256 = dma.hbm_to_vmem [thread:$0]  %s249, 8192, %s251, [#allocation9], 128, 128, 8
        $region24: #{tpu_custom_call.1} parent=11 // pred_fallthru
          _
        // Predicated region
        $region25: #{tpu_custom_call.1} parent=11 // pred_check
          %p257 = pneg %p132
        $region26: #{tpu_custom_call.1} parent=11 // pred_check_branch
          %259 = sbr.rel (%p257) target = $region28
        $region27: #{tpu_custom_call.1} parent=11 // pred_region
          %261 = vsyncadd [#allocation9], 0
          %s262 = sshll.u32 %s4, 4
          %s263 = int_to_ptr.hbm [resolvable:$true] %s262
          %s264 = sshll.u32 [#allocation10], 4
          %s265 = int_to_ptr.vmem [resolvable:$true] %s264
          %270 = dma.hbm_to_vmem [thread:$0]  %s263, 64, %s265, [#allocation9], 16, 16, 1
        $region28: #{tpu_custom_call.1} parent=11 // pred_fallthru
          _
        // Predicated region
        $region29: #{tpu_custom_call.1} parent=11 // pred_check
          %p271 = pneg %p153
        $region30: #{tpu_custom_call.1} parent=11 // pred_check_branch
          %273 = sbr.rel (%p271) target = $region32
        $region31: #{tpu_custom_call.1} parent=11 // pred_region
          %275 = vsyncadd [#allocation12], 0
          %s276 = sshll.u32 %s5, 4
          %s277 = int_to_ptr.hbm [resolvable:$true] %s276
          %s278 = sshll.u32 [#allocation11], 4
          %s279 = int_to_ptr.vmem [resolvable:$true] %s278
          %284 = dma.hbm_to_vmem [thread:$0]  %s277, 2048, %s279, [#allocation12], 128, 128, 8
        $region32: #{tpu_custom_call.1} parent=11 // pred_fallthru
          _
        // Predicated region
        $region33: #{tpu_custom_call.1} parent=11 // pred_check
          %p285 = pneg %p174
        $region34: #{tpu_custom_call.1} parent=11 // pred_check_branch
          %287 = sbr.rel (%p285) target = $region36
        $region35: #{tpu_custom_call.1} parent=11 // pred_region
          _
        $region36: #{tpu_custom_call.1} parent=11 // pred_fallthru
          _
      $region12: #{tpu_custom_call.1} parent=5 // pred_fallthru
        _
      %p288 = scmp.lt.s32.totalorder %s22, 2
      // Predicated region
      $region37: #{tpu_custom_call.1} parent=5 // pred_check
        %p289 = pneg %p288
      $region38: #{tpu_custom_call.1} parent=5 // pred_check_branch
        %291 = sbr.rel (%p289) target = $region40
      $region39: #{tpu_custom_call.1} parent=5 // pred_region
        // Predicated region
        $region41: #{tpu_custom_call.1} parent=39 // pred_check
          %p292 = pneg %p42
        $region42: #{tpu_custom_call.1} parent=39 // pred_check_branch
          %294 = sbr.rel (%p292) target = $region44
        $region43: #{tpu_custom_call.1} parent=39 // pred_region
          %s295 = sand.u32 %s32, 1
          %s296 = scalar_lea.sflag [#allocation3], %s295
          %s297 = sand.u32 %s32, 1
          %s298 = smul.addr %s297, 8
          %s299 = scalar_lea.vmem [#allocation2], %s298
          %301 = vsyncadd %s296, 0
          %s302 = smul.addr %s22, 8
          %s303 = scalar_lea.hbm %s0, %s302
          %s305 = sshll.u32 %s303, 4
          %s306 = int_to_ptr.hbm [resolvable:$true] %s305
          %s307 = sshll.u32 %s299, 4
          %s308 = int_to_ptr.vmem [resolvable:$true] %s307
          %310 = dma.hbm_to_vmem [thread:$0]  %s306, 128, %s308, %s296
        $region44: #{tpu_custom_call.1} parent=39 // pred_fallthru
          _
      $region40: #{tpu_custom_call.1} parent=5 // pred_fallthru
        _
      %p311 = scmp.le.s32.totalorder 1, %s22
      %p312 = scmp.lt.s32.totalorder %s22, 3
      %p313 = pnand %p311, %p312
      %p314 = pneg %p313
      // Predicated region
      $region45: #{tpu_custom_call.1} parent=5 // pred_check
        _
      $region46: #{tpu_custom_call.1} parent=5 // pred_check_branch
        %316 = sbr.rel (%p313) target = $region48
      $region47: #{tpu_custom_call.1} parent=5 // pred_region
        %s317 = ssub.s32 %s22, 1
        %s318 = sand.u32 %s35, 1
        %s319 = scalar_lea.sflag [#allocation3], %s318
        %s320 = sand.u32 %s35, 1
        %s321 = smul.addr %s320, 8
        %s322 = scalar_lea.vmem [#allocation2], %s321
        // Predicated region
        $region49: #{tpu_custom_call.1} parent=47 // pred_check
          %p323 = pneg %p48
        $region50: #{tpu_custom_call.1} parent=47 // pred_check_branch
          %325 = sbr.rel (%p323) target = $region52
        $region51: #{tpu_custom_call.1} parent=47 // pred_region
          %327 = dma.done %s319, 128
        $region52: #{tpu_custom_call.1} parent=47 // pred_fallthru
          _
        // Predicated region
        $region53: #{tpu_custom_call.1} parent=47 // pred_check
          %p328 = pneg %p69
        $region54: #{tpu_custom_call.1} parent=47 // pred_check_branch
          %330 = sbr.rel (%p328) target = $region56
        $region55: #{tpu_custom_call.1} parent=47 // pred_region
          %332 = dma.done [#allocation6], 8192
        $region56: #{tpu_custom_call.1} parent=47 // pred_fallthru
          _
        // Predicated region
        $region57: #{tpu_custom_call.1} parent=47 // pred_check
          %p333 = pneg %p90
        $region58: #{tpu_custom_call.1} parent=47 // pred_check_branch
          %335 = sbr.rel (%p333) target = $region60
        $region59: #{tpu_custom_call.1} parent=47 // pred_region
          %337 = dma.done [#allocation6], 64
        $region60: #{tpu_custom_call.1} parent=47 // pred_fallthru
          _
        // Predicated region
        $region61: #{tpu_custom_call.1} parent=47 // pred_check
          %p338 = pneg %p111
        $region62: #{tpu_custom_call.1} parent=47 // pred_check_branch
          %340 = sbr.rel (%p338) target = $region64
        $region63: #{tpu_custom_call.1} parent=47 // pred_region
          %342 = dma.done [#allocation9], 8192
        $region64: #{tpu_custom_call.1} parent=47 // pred_fallthru
          _
        // Predicated region
        $region65: #{tpu_custom_call.1} parent=47 // pred_check
          %p343 = pneg %p132
        $region66: #{tpu_custom_call.1} parent=47 // pred_check_branch
          %345 = sbr.rel (%p343) target = $region68
        $region67: #{tpu_custom_call.1} parent=47 // pred_region
          %347 = dma.done [#allocation9], 64
        $region68: #{tpu_custom_call.1} parent=47 // pred_fallthru
          _
        // Predicated region
        $region69: #{tpu_custom_call.1} parent=47 // pred_check
          %p348 = pneg %p153
        $region70: #{tpu_custom_call.1} parent=47 // pred_check_branch
          %350 = sbr.rel (%p348) target = $region72
        $region71: #{tpu_custom_call.1} parent=47 // pred_region
          %352 = dma.done [#allocation12], 2048
        $region72: #{tpu_custom_call.1} parent=47 // pred_fallthru
          _
        %s353 = sand.u32 %s35, 1
        %s354 = scalar_lea.sflag [#allocation3], %s353
        %s355 = sand.u32 %s35, 1
        %s356 = smul.addr %s355, 8
        %s357 = scalar_lea.vmem [#allocation2], %s356
        %p358 = pneg %p48
        %p359 = pneg %p45
        %p360 = pneg %p69
        %p361 = pneg %p66
        %p362 = pneg %p90
        %p363 = pneg %p87
        %p364 = pneg %p111
        %p365 = pneg %p108
        %p366 = pneg %p132
        %p367 = pneg %p129
        %p368 = pneg %p153
        %p369 = pneg %p150
        %p370 = pneg %p174
        %p371 = pneg %p171
        %p372 = pneg %p200
        %p373 = pneg %p197
        %s374 = sand.u32 %s187, 1
        %s375 = scalar_lea.sflag [#allocation4], %s374
        %s376 = sand.u32 %s187, 1
        %s377 = smul.addr %s376, 8
        %s378 = scalar_lea.vmem [#allocation13], %s377
        %v379 = vld [vmem:[%s322] sm:$0xff]
        %v380 = vld [vmem:[#allocation5] sm:$0xff]
        %v381 = vld [vmem:[#allocation5 + $0x8] sm:$0xff]
        %v382 = vld [vmem:[#allocation5 + $0x10] sm:$0xff]
        %v383 = vld [vmem:[#allocation5 + $0x18] sm:$0xff]
        %v384 = vld [vmem:[#allocation5 + $0x20] sm:$0xff]
        %v385 = vld [vmem:[#allocation5 + $0x28] sm:$0xff]
        %v386 = vld [vmem:[#allocation5 + $0x30] sm:$0xff]
        %v387 = vld [vmem:[#allocation5 + $0x38] sm:$0xff]
        %v388 = vld [vmem:[#allocation5 + $0x40] sm:$0xff]
        %v389 = vld [vmem:[#allocation5 + $0x48] sm:$0xff]
        %v390 = vld [vmem:[#allocation5 + $0x50] sm:$0xff]
        %v391 = vld [vmem:[#allocation5 + $0x58] sm:$0xff]
        %v392 = vld [vmem:[#allocation5 + $0x60] sm:$0xff]
        %v393 = vld [vmem:[#allocation5 + $0x68] sm:$0xff]
        %v394 = vld [vmem:[#allocation5 + $0x70] sm:$0xff]
        %v395 = vld [vmem:[#allocation5 + $0x78] sm:$0xff]
        %v396 = vld [vmem:[#allocation7] sm:$0x1]
        %v398 = vperm.slane %v396, 0
        %400 = vmatpush.msra.mxu0 %v395
        %401 = vmatpush.msra.mxu0 %v394
        %402 = vmatpush.msra.mxu0 %v393
        %403 = vmatpush.msra.mxu0 %v392
        %404 = vmatpush.msra.mxu0 %v391
        %405 = vmatpush.msra.mxu0 %v390
        %406 = vmatpush.msra.mxu0 %v389
        %407 = vmatpush.msra.mxu0 %v388
        %408 = vmatpush.msra.mxu0 %v387
        %409 = vmatpush.msra.mxu0 %v386
        %410 = vmatpush.msra.mxu0 %v385
        %411 = vmatpush.msra.mxu0 %v384
        %412 = vmatpush.msra.mxu0 %v383
        %413 = vmatpush.msra.mxu0 %v382
        %414 = vmatpush.msra.mxu0 %v381
        %415 = vmatpush.msra.mxu0 %v380
        %416 = vmatmul.f32.gmra.mxu0 %v379
        %v417 = vpop.f32.mrf.mxu0
        %v418 = vadd.f32 %v398, %v417
        %419 = vdwg.mxu0
        %s420 = scalar_lea.vmem [#allocation5], 128
        %v421 = vld [vmem:[%s420] sm:$0xff]
        %v422 = vld [vmem:[%s420 + $0x8] sm:$0xff]
        %v423 = vld [vmem:[%s420 + $0x10] sm:$0xff]
        %v424 = vld [vmem:[%s420 + $0x18] sm:$0xff]
        %v425 = vld [vmem:[%s420 + $0x20] sm:$0xff]
        %v426 = vld [vmem:[%s420 + $0x28] sm:$0xff]
        %v427 = vld [vmem:[%s420 + $0x30] sm:$0xff]
        %v428 = vld [vmem:[%s420 + $0x38] sm:$0xff]
        %v429 = vld [vmem:[%s420 + $0x40] sm:$0xff]
        %v430 = vld [vmem:[%s420 + $0x48] sm:$0xff]
        %v431 = vld [vmem:[%s420 + $0x50] sm:$0xff]
        %v432 = vld [vmem:[%s420 + $0x58] sm:$0xff]
        %v433 = vld [vmem:[%s420 + $0x60] sm:$0xff]
        %v434 = vld [vmem:[%s420 + $0x68] sm:$0xff]
        %v435 = vld [vmem:[%s420 + $0x70] sm:$0xff]
        %v436 = vld [vmem:[%s420 + $0x78] sm:$0xff]
        %s437 = scalar_lea.vmem [#allocation7], 1
        %v438 = vld [vmem:[%s437] sm:$0x1]
        %v440 = vperm.slane %v438, 0
        %442 = vmatpush.msra.mxu0 %v436
        %443 = vmatpush.msra.mxu0 %v435
        %444 = vmatpush.msra.mxu0 %v434
        %445 = vmatpush.msra.mxu0 %v433
        %446 = vmatpush.msra.mxu0 %v432
        %447 = vmatpush.msra.mxu0 %v431
        %448 = vmatpush.msra.mxu0 %v430
        %449 = vmatpush.msra.mxu0 %v429
        %450 = vmatpush.msra.mxu0 %v428
        %451 = vmatpush.msra.mxu0 %v427
        %452 = vmatpush.msra.mxu0 %v426
        %453 = vmatpush.msra.mxu0 %v425
        %454 = vmatpush.msra.mxu0 %v424
        %455 = vmatpush.msra.mxu0 %v423
        %456 = vmatpush.msra.mxu0 %v422
        %457 = vmatpush.msra.mxu0 %v421
        %458 = vmatmul.f32.gmra.mxu0 %v379
        %v459 = vpop.f32.mrf.mxu0
        %v460 = vadd.f32 %v440, %v459
        %461 = vdwg.mxu0
        %v462 = vmax.f32 %v418, %v460
        %s463 = scalar_lea.vmem [#allocation5], 256
        %v464 = vld [vmem:[%s463] sm:$0xff]
        %v465 = vld [vmem:[%s463 + $0x8] sm:$0xff]
        %v466 = vld [vmem:[%s463 + $0x10] sm:$0xff]
        %v467 = vld [vmem:[%s463 + $0x18] sm:$0xff]
        %v468 = vld [vmem:[%s463 + $0x20] sm:$0xff]
        %v469 = vld [vmem:[%s463 + $0x28] sm:$0xff]
        %v470 = vld [vmem:[%s463 + $0x30] sm:$0xff]
        %v471 = vld [vmem:[%s463 + $0x38] sm:$0xff]
        %v472 = vld [vmem:[%s463 + $0x40] sm:$0xff]
        %v473 = vld [vmem:[%s463 + $0x48] sm:$0xff]
        %v474 = vld [vmem:[%s463 + $0x50] sm:$0xff]
        %v475 = vld [vmem:[%s463 + $0x58] sm:$0xff]
        %v476 = vld [vmem:[%s463 + $0x60] sm:$0xff]
        %v477 = vld [vmem:[%s463 + $0x68] sm:$0xff]
        %v478 = vld [vmem:[%s463 + $0x70] sm:$0xff]
        %v479 = vld [vmem:[%s463 + $0x78] sm:$0xff]
        %s480 = scalar_lea.vmem [#allocation7], 2
        %v481 = vld [vmem:[%s480] sm:$0x1]
        %v483 = vperm.slane %v481, 0
        %485 = vmatpush.msra.mxu0 %v479
        %486 = vmatpush.msra.mxu0 %v478
        %487 = vmatpush.msra.mxu0 %v477
        %488 = vmatpush.msra.mxu0 %v476
        %489 = vmatpush.msra.mxu0 %v475
        %490 = vmatpush.msra.mxu0 %v474
        %491 = vmatpush.msra.mxu0 %v473
        %492 = vmatpush.msra.mxu0 %v472
        %493 = vmatpush.msra.mxu0 %v471
        %494 = vmatpush.msra.mxu0 %v470
        %495 = vmatpush.msra.mxu0 %v469
        %496 = vmatpush.msra.mxu0 %v468
        %497 = vmatpush.msra.mxu0 %v467
        %498 = vmatpush.msra.mxu0 %v466
        %499 = vmatpush.msra.mxu0 %v465
        %500 = vmatpush.msra.mxu0 %v464
        %501 = vmatmul.f32.gmra.mxu0 %v379
        %v502 = vpop.f32.mrf.mxu0
        %v503 = vadd.f32 %v483, %v502
        %504 = vdwg.mxu0
        %v505 = vmax.f32 %v462, %v503
        %s506 = scalar_lea.vmem [#allocation5], 384
        %v507 = vld [vmem:[%s506] sm:$0xff]
        %v508 = vld [vmem:[%s506 + $0x8] sm:$0xff]
        %v509 = vld [vmem:[%s506 + $0x10] sm:$0xff]
        %v510 = vld [vmem:[%s506 + $0x18] sm:$0xff]
        %v511 = vld [vmem:[%s506 + $0x20] sm:$0xff]
        %v512 = vld [vmem:[%s506 + $0x28] sm:$0xff]
        %v513 = vld [vmem:[%s506 + $0x30] sm:$0xff]
        %v514 = vld [vmem:[%s506 + $0x38] sm:$0xff]
        %v515 = vld [vmem:[%s506 + $0x40] sm:$0xff]
        %v516 = vld [vmem:[%s506 + $0x48] sm:$0xff]
        %v517 = vld [vmem:[%s506 + $0x50] sm:$0xff]
        %v518 = vld [vmem:[%s506 + $0x58] sm:$0xff]
        %v519 = vld [vmem:[%s506 + $0x60] sm:$0xff]
        %v520 = vld [vmem:[%s506 + $0x68] sm:$0xff]
        %v521 = vld [vmem:[%s506 + $0x70] sm:$0xff]
        %v522 = vld [vmem:[%s506 + $0x78] sm:$0xff]
        %s523 = scalar_lea.vmem [#allocation7], 3
        %v524 = vld [vmem:[%s523] sm:$0x1]
        %v526 = vperm.slane %v524, 0
        %528 = vmatpush.msra.mxu0 %v522
        %529 = vmatpush.msra.mxu0 %v521
        %530 = vmatpush.msra.mxu0 %v520
        %531 = vmatpush.msra.mxu0 %v519
        %532 = vmatpush.msra.mxu0 %v518
        %533 = vmatpush.msra.mxu0 %v517
        %534 = vmatpush.msra.mxu0 %v516
        %535 = vmatpush.msra.mxu0 %v515
        %536 = vmatpush.msra.mxu0 %v514
        %537 = vmatpush.msra.mxu0 %v513
        %538 = vmatpush.msra.mxu0 %v512
        %539 = vmatpush.msra.mxu0 %v511
        %540 = vmatpush.msra.mxu0 %v510
        %541 = vmatpush.msra.mxu0 %v509
        %542 = vmatpush.msra.mxu0 %v508
        %543 = vmatpush.msra.mxu0 %v507
        %544 = vmatmul.f32.gmra.mxu0 %v379
        %v545 = vpop.f32.mrf.mxu0
        %v546 = vadd.f32 %v526, %v545
        %547 = vdwg.mxu0
        %v548 = vmax.f32 %v505, %v546
        %v549 = vld [vmem:[#allocation8] sm:$0xff]
        %v550 = vld [vmem:[#allocation8 + $0x8] sm:$0xff]
        %v551 = vld [vmem:[#allocation8 + $0x10] sm:$0xff]
        %v552 = vld [vmem:[#allocation8 + $0x18] sm:$0xff]
        %v553 = vld [vmem:[#allocation8 + $0x20] sm:$0xff]
        %v554 = vld [vmem:[#allocation8 + $0x28] sm:$0xff]
        %v555 = vld [vmem:[#allocation8 + $0x30] sm:$0xff]
        %v556 = vld [vmem:[#allocation8 + $0x38] sm:$0xff]
        %v557 = vld [vmem:[#allocation8 + $0x40] sm:$0xff]
        %v558 = vld [vmem:[#allocation8 + $0x48] sm:$0xff]
        %v559 = vld [vmem:[#allocation8 + $0x50] sm:$0xff]
        %v560 = vld [vmem:[#allocation8 + $0x58] sm:$0xff]
        %v561 = vld [vmem:[#allocation8 + $0x60] sm:$0xff]
        %v562 = vld [vmem:[#allocation8 + $0x68] sm:$0xff]
        %v563 = vld [vmem:[#allocation8 + $0x70] sm:$0xff]
        %v564 = vld [vmem:[#allocation8 + $0x78] sm:$0xff]
        %v565 = vld [vmem:[#allocation10] sm:$0x1]
        %v567 = vperm.slane %v565, 0
        %569 = vmatpush.msra.mxu0 %v564
        %570 = vmatpush.msra.mxu0 %v563
        %571 = vmatpush.msra.mxu0 %v562
        %572 = vmatpush.msra.mxu0 %v561
        %573 = vmatpush.msra.mxu0 %v560
        %574 = vmatpush.msra.mxu0 %v559
        %575 = vmatpush.msra.mxu0 %v558
        %576 = vmatpush.msra.mxu0 %v557
        %577 = vmatpush.msra.mxu0 %v556
        %578 = vmatpush.msra.mxu0 %v555
        %579 = vmatpush.msra.mxu0 %v554
        %580 = vmatpush.msra.mxu0 %v553
        %581 = vmatpush.msra.mxu0 %v552
        %582 = vmatpush.msra.mxu0 %v551
        %583 = vmatpush.msra.mxu0 %v550
        %584 = vmatpush.msra.mxu0 %v549
        %585 = vmatmul.f32.gmra.mxu0 %v548
        %v586 = vpop.f32.mrf.mxu0
        %v587 = vadd.f32 %v567, %v586
        %588 = vdwg.mxu0
        %s589 = scalar_lea.vmem [#allocation8], 128
        %v590 = vld [vmem:[%s589] sm:$0xff]
        %v591 = vld [vmem:[%s589 + $0x8] sm:$0xff]
        %v592 = vld [vmem:[%s589 + $0x10] sm:$0xff]
        %v593 = vld [vmem:[%s589 + $0x18] sm:$0xff]
        %v594 = vld [vmem:[%s589 + $0x20] sm:$0xff]
        %v595 = vld [vmem:[%s589 + $0x28] sm:$0xff]
        %v596 = vld [vmem:[%s589 + $0x30] sm:$0xff]
        %v597 = vld [vmem:[%s589 + $0x38] sm:$0xff]
        %v598 = vld [vmem:[%s589 + $0x40] sm:$0xff]
        %v599 = vld [vmem:[%s589 + $0x48] sm:$0xff]
        %v600 = vld [vmem:[%s589 + $0x50] sm:$0xff]
        %v601 = vld [vmem:[%s589 + $0x58] sm:$0xff]
        %v602 = vld [vmem:[%s589 + $0x60] sm:$0xff]
        %v603 = vld [vmem:[%s589 + $0x68] sm:$0xff]
        %v604 = vld [vmem:[%s589 + $0x70] sm:$0xff]
        %v605 = vld [vmem:[%s589 + $0x78] sm:$0xff]
        %s606 = scalar_lea.vmem [#allocation10], 1
        %v607 = vld [vmem:[%s606] sm:$0x1]
        %v609 = vperm.slane %v607, 0
        %611 = vmatpush.msra.mxu0 %v605
        %612 = vmatpush.msra.mxu0 %v604
        %613 = vmatpush.msra.mxu0 %v603
        %614 = vmatpush.msra.mxu0 %v602
        %615 = vmatpush.msra.mxu0 %v601
        %616 = vmatpush.msra.mxu0 %v600
        %617 = vmatpush.msra.mxu0 %v599
        %618 = vmatpush.msra.mxu0 %v598
        %619 = vmatpush.msra.mxu0 %v597
        %620 = vmatpush.msra.mxu0 %v596
        %621 = vmatpush.msra.mxu0 %v595
        %622 = vmatpush.msra.mxu0 %v594
        %623 = vmatpush.msra.mxu0 %v593
        %624 = vmatpush.msra.mxu0 %v592
        %625 = vmatpush.msra.mxu0 %v591
        %626 = vmatpush.msra.mxu0 %v590
        %627 = vmatmul.f32.gmra.mxu0 %v548
        %v628 = vpop.f32.mrf.mxu0
        %v629 = vadd.f32 %v609, %v628
        %630 = vdwg.mxu0
        %v631 = vmax.f32 %v587, %v629
        %s632 = scalar_lea.vmem [#allocation8], 256
        %v633 = vld [vmem:[%s632] sm:$0xff]
        %v634 = vld [vmem:[%s632 + $0x8] sm:$0xff]
        %v635 = vld [vmem:[%s632 + $0x10] sm:$0xff]
        %v636 = vld [vmem:[%s632 + $0x18] sm:$0xff]
        %v637 = vld [vmem:[%s632 + $0x20] sm:$0xff]
        %v638 = vld [vmem:[%s632 + $0x28] sm:$0xff]
        %v639 = vld [vmem:[%s632 + $0x30] sm:$0xff]
        %v640 = vld [vmem:[%s632 + $0x38] sm:$0xff]
        %v641 = vld [vmem:[%s632 + $0x40] sm:$0xff]
        %v642 = vld [vmem:[%s632 + $0x48] sm:$0xff]
        %v643 = vld [vmem:[%s632 + $0x50] sm:$0xff]
        %v644 = vld [vmem:[%s632 + $0x58] sm:$0xff]
        %v645 = vld [vmem:[%s632 + $0x60] sm:$0xff]
        %v646 = vld [vmem:[%s632 + $0x68] sm:$0xff]
        %v647 = vld [vmem:[%s632 + $0x70] sm:$0xff]
        %v648 = vld [vmem:[%s632 + $0x78] sm:$0xff]
        %s649 = scalar_lea.vmem [#allocation10], 2
        %v650 = vld [vmem:[%s649] sm:$0x1]
        %v652 = vperm.slane %v650, 0
        %654 = vmatpush.msra.mxu0 %v648
        %655 = vmatpush.msra.mxu0 %v647
        %656 = vmatpush.msra.mxu0 %v646
        %657 = vmatpush.msra.mxu0 %v645
        %658 = vmatpush.msra.mxu0 %v644
        %659 = vmatpush.msra.mxu0 %v643
        %660 = vmatpush.msra.mxu0 %v642
        %661 = vmatpush.msra.mxu0 %v641
        %662 = vmatpush.msra.mxu0 %v640
        %663 = vmatpush.msra.mxu0 %v639
        %664 = vmatpush.msra.mxu0 %v638
        %665 = vmatpush.msra.mxu0 %v637
        %666 = vmatpush.msra.mxu0 %v636
        %667 = vmatpush.msra.mxu0 %v635
        %668 = vmatpush.msra.mxu0 %v634
        %669 = vmatpush.msra.mxu0 %v633
        %670 = vmatmul.f32.gmra.mxu0 %v548
        %v671 = vpop.f32.mrf.mxu0
        %v672 = vadd.f32 %v652, %v671
        %673 = vdwg.mxu0
        %v674 = vmax.f32 %v631, %v672
        %s675 = scalar_lea.vmem [#allocation8], 384
        %v676 = vld [vmem:[%s675] sm:$0xff]
        %v677 = vld [vmem:[%s675 + $0x8] sm:$0xff]
        %v678 = vld [vmem:[%s675 + $0x10] sm:$0xff]
        %v679 = vld [vmem:[%s675 + $0x18] sm:$0xff]
        %v680 = vld [vmem:[%s675 + $0x20] sm:$0xff]
        %v681 = vld [vmem:[%s675 + $0x28] sm:$0xff]
        %v682 = vld [vmem:[%s675 + $0x30] sm:$0xff]
        %v683 = vld [vmem:[%s675 + $0x38] sm:$0xff]
        %v684 = vld [vmem:[%s675 + $0x40] sm:$0xff]
        %v685 = vld [vmem:[%s675 + $0x48] sm:$0xff]
        %v686 = vld [vmem:[%s675 + $0x50] sm:$0xff]
        %v687 = vld [vmem:[%s675 + $0x58] sm:$0xff]
        %v688 = vld [vmem:[%s675 + $0x60] sm:$0xff]
        %v689 = vld [vmem:[%s675 + $0x68] sm:$0xff]
        %v690 = vld [vmem:[%s675 + $0x70] sm:$0xff]
        %v691 = vld [vmem:[%s675 + $0x78] sm:$0xff]
        %s692 = scalar_lea.vmem [#allocation10], 3
        %v693 = vld [vmem:[%s692] sm:$0x1]
        %v695 = vperm.slane %v693, 0
        %697 = vmatpush.msra.mxu0 %v691
        %698 = vmatpush.msra.mxu0 %v690
        %699 = vmatpush.msra.mxu0 %v689
        %700 = vmatpush.msra.mxu0 %v688
        %701 = vmatpush.msra.mxu0 %v687
        %702 = vmatpush.msra.mxu0 %v686
        %703 = vmatpush.msra.mxu0 %v685
        %704 = vmatpush.msra.mxu0 %v684
        %705 = vmatpush.msra.mxu0 %v683
        %706 = vmatpush.msra.mxu0 %v682
        %707 = vmatpush.msra.mxu0 %v681
        %708 = vmatpush.msra.mxu0 %v680
        %709 = vmatpush.msra.mxu0 %v679
        %710 = vmatpush.msra.mxu0 %v678
        %711 = vmatpush.msra.mxu0 %v677
        %712 = vmatpush.msra.mxu0 %v676
        %713 = vmatmul.f32.gmra.mxu0 %v548
        %v714 = vpop.f32.mrf.mxu0
        %v715 = vadd.f32 %v695, %v714
        %716 = vdwg.mxu0
        %v717 = vmax.f32 %v674, %v715
        %v718 = vld [vmem:[#allocation11] sm:$0xff]
        %v719 = vld [vmem:[#allocation11 + $0x8] sm:$0xff]
        %v720 = vld [vmem:[#allocation11 + $0x10] sm:$0xff]
        %v721 = vld [vmem:[#allocation11 + $0x18] sm:$0xff]
        %v722 = vld [vmem:[#allocation11 + $0x20] sm:$0xff]
        %v723 = vld [vmem:[#allocation11 + $0x28] sm:$0xff]
        %v724 = vld [vmem:[#allocation11 + $0x30] sm:$0xff]
        %v725 = vld [vmem:[#allocation11 + $0x38] sm:$0xff]
        %v726 = vld [vmem:[#allocation11 + $0x40] sm:$0xff]
        %v727 = vld [vmem:[#allocation11 + $0x48] sm:$0xff]
        %v728 = vld [vmem:[#allocation11 + $0x50] sm:$0xff]
        %v729 = vld [vmem:[#allocation11 + $0x58] sm:$0xff]
        %v730 = vld [vmem:[#allocation11 + $0x60] sm:$0xff]
        %v731 = vld [vmem:[#allocation11 + $0x68] sm:$0xff]
        %v732 = vld [vmem:[#allocation11 + $0x70] sm:$0xff]
        %v733 = vld [vmem:[#allocation11 + $0x78] sm:$0xff]
        %v734 = vld [vmem:[%s6] sm:$0x1]
        %v736 = vperm.slane %v734, 0
        %738 = vmatpush.msra.mxu0 %v733
        %739 = vmatpush.msra.mxu0 %v732
        %740 = vmatpush.msra.mxu0 %v731
        %741 = vmatpush.msra.mxu0 %v730
        %742 = vmatpush.msra.mxu0 %v729
        %743 = vmatpush.msra.mxu0 %v728
        %744 = vmatpush.msra.mxu0 %v727
        %745 = vmatpush.msra.mxu0 %v726
        %746 = vmatpush.msra.mxu0 %v725
        %747 = vmatpush.msra.mxu0 %v724
        %748 = vmatpush.msra.mxu0 %v723
        %749 = vmatpush.msra.mxu0 %v722
        %750 = vmatpush.msra.mxu0 %v721
        %751 = vmatpush.msra.mxu0 %v720
        %752 = vmatpush.msra.mxu0 %v719
        %753 = vmatpush.msra.mxu0 %v718
        %754 = vmatmul.f32.gmra.mxu0 %v717
        %v755 = vpop.f32.mrf.mxu0
        %v756 = vadd.f32 %v736, %v755
        %757 = vdwg.mxu0
        %v758 = vlaneseq
        %v759 = vand.u32 %v758, 127
        %vm760 = vcmp.lt.s32.totalorder %v759, 10
        %v761 = vsel %vm760, %v756, -inf
        %762 = vmax.xlane.f32.xlu0 %v761
        %v763 = vpop.xlane.xlu0 %762
        %v764 = vsub.f32 %v761, %v763
        %v765 = vmul.f32 %v764, 1.442695
        %v766 = vpow.pop %v765
        %767 = vadd.xlane.f32.xlu0 %v766
        %v768 = vpop.xlane.xlu0 %767
        %v769 = vlog2.pop %v768
        %v770 = vmul.f32 %v769, 0.6931472
        %v771 = vadd.f32 %v770, %v763
        %v772 = vsub.f32 %v761, %v771
        %773 = vst [vmem:[%s378] sm:$0xff] %v772
        %s774 = sand.u32 %s187, 1
        %s775 = scalar_lea.sflag [#allocation4], %s774
        %s776 = sand.u32 %s187, 1
        %s777 = smul.addr %s776, 8
        %s778 = scalar_lea.vmem [#allocation13], %s777
        // Predicated region
        $region73: #{tpu_custom_call.1} parent=47 // pred_check
          %p779 = pneg %p197
        $region74: #{tpu_custom_call.1} parent=47 // pred_check_branch
          %781 = sbr.rel (%p779) target = $region76
        $region75: #{tpu_custom_call.1} parent=47 // pred_region
          %783 = vsyncadd %s775, 0
          %s784 = smul.addr %s27, 8
          %s785 = scalar_lea.hbm %s7, %s784
          %s787 = sshll.u32 %s778, 4
          %s788 = int_to_ptr.vmem [resolvable:$true] %s787
          %s789 = sshll.u32 %s785, 4
          %s790 = int_to_ptr.hbm [resolvable:$true] %s789
          %792 = dma.vmem_to_hbm [thread:$0]  %s788, 128, %s790, %s775
        $region76: #{tpu_custom_call.1} parent=47 // pred_fallthru
          _
      $region48: #{tpu_custom_call.1} parent=5 // pred_fallthru
        _
      %p793 = scmp.le.s32.totalorder 2, %s22
      // Predicated region
      $region77: #{tpu_custom_call.1} parent=5 // pred_check
        %p794 = pneg %p793
      $region78: #{tpu_custom_call.1} parent=5 // pred_check_branch
        %796 = sbr.rel (%p794) target = $region80
      $region79: #{tpu_custom_call.1} parent=5 // pred_region
        %s797 = ssub.s32 %s22, 2
        // Predicated region
        $region81: #{tpu_custom_call.1} parent=79 // pred_check
          %p798 = pneg %p203
        $region82: #{tpu_custom_call.1} parent=79 // pred_check_branch
          %800 = sbr.rel (%p798) target = $region84
        $region83: #{tpu_custom_call.1} parent=79 // pred_region
          %s801 = sand.u32 %s188, 1
          %s802 = scalar_lea.sflag [#allocation4], %s801
          %s803 = sand.u32 %s188, 1
          %s804 = smul.addr %s803, 8
          %s805 = scalar_lea.vmem [#allocation13], %s804
          %807 = dma.done %s802, 128
        $region84: #{tpu_custom_call.1} parent=79 // pred_fallthru
          _
      $region80: #{tpu_custom_call.1} parent=5 // pred_fallthru
        _
    $region6: #{tpu_custom_call.1} parent=1 // loop_footer
      %s26 = sadd.s32 1, %s22
    $region7: #{tpu_custom_call.1} parent=1 // loop_footer_branch
      %21 = sbr.rel target = $region3
    $region8: #{tpu_custom_call.1} parent=1 // loop_exit
      _
    %808 = vsyncpa [#allocation3], 1
    %s809 = scalar_lea.sflag [#allocation3], 1
    %810 = vsyncpa %s809, 1
    %811 = vsyncpa [#allocation6], 1
    %812 = vsyncpa [#allocation9], 1
    %813 = vsyncpa [#allocation12], 1
    %814 = vsyncpa [#allocation4], 1
    %s815 = scalar_lea.sflag [#allocation4], 1
    %816 = vsyncpa %s815, 1

</llo_original>
